<compile_context>
chip_gen: v6e
topology: v6e:2x2x1
jax: 0.10.0
libtpu: 0.0.40
codegen_flags: <defaults>
</compile_context>

<pallas_src>
import jax
import jax.numpy as jnp
from jax.experimental import pallas as pl
from jax.experimental.pallas import tpu as pltpu


# --------------------------------------------------------------------------- #
# PE table construction (mirrors PositionalEncoding.__init__)
# --------------------------------------------------------------------------- #
def _make_pe_table(d_model: int, max_len: int = 5000, dtype=jnp.float32) -> jnp.ndarray:
    """Sinusoidal PE buffer, built once in the target dtype (no per-call cast)."""
    position = jnp.arange(0, max_len, dtype=jnp.float32)[:, None]          # (max_len, 1)
    div_term = jnp.exp(
        jnp.arange(0, d_model, 2, dtype=jnp.float32)
        * (-(jnp.log(jnp.float32(10000.0)) / d_model))
    )                                                                       # (d_model/2,)
    angles = position * div_term                                            # (max_len, d_model/2)
    pe = jnp.zeros((max_len, d_model), dtype=jnp.float32)
    pe = pe.at[:, 0::2].set(jnp.sin(angles))
    pe = pe.at[:, 1::2].set(jnp.cos(angles))
    return pe[None, :, :].astype(dtype)                                     # (1, max_len, d_model)


# --------------------------------------------------------------------------- #
# Kernel body
# --------------------------------------------------------------------------- #
def _add_pe_kernel(x_ref, pe_ref, o_ref):
    # (B, tile_s, D) + (1, tile_s, D) broadcast add — pure VPU, memory bound.
    o_ref[...] = x_ref[...] + pe_ref[...]


# --------------------------------------------------------------------------- #
# Tiling heuristics (generation-aware, layout-padding-aware)
# --------------------------------------------------------------------------- #
def _round_up(x: int, m: int) -> int:
    return (x + m - 1) // m * m


def _sublane(itemsize: int) -> int:
    # Sublane packing depth: f32 -> 8, bf16 -> 16, int8/fp8 -> 32.
    return {4: 8, 2: 16, 1: 32}.get(itemsize, 8)


def _generation_params():
    """Returns (target x-block bytes, scoped-VMEM budget bytes, physical cap bytes)."""
    try:
        kind = jax.devices()[0].device_kind.lower()
    except Exception:
        kind = ""
    if "v7" in kind:
        # v7x: ~2.4x v6e HBM BW -> bigger blocks amortize the ~0.35us/step cost,
        # but only 64 MiB physical VMEM per TensorCore.
        return 6 << 20, 40 << 20, 56 << 20
    if "v5" in kind:
        # v5e: 16 MiB scoped-VMEM default, lowest HBM BW -> small blocks are fine.
        return (5 << 18), 16 << 20, 100 << 20       # 1.25 MiB target
    # v6e / unknown.
    return 3 << 20, 32 << 20, 100 << 20


def _vmem_estimate(B: int, tile_s: int, D: int, itemsize: int) -> int:
    """Double-buffered, layout-padded VMEM footprint of the x, out and pe blocks."""
    sub = _sublane(itemsize)
    d_pad = _round_up(D, 128)
    s_pad = _round_up(tile_s, sub)
    x_blk = B * s_pad * d_pad * itemsize            # x block (== out block)
    pe_blk = s_pad * d_pad * itemsize               # (1, tile_s, D) PE block
    return 2 * (2 * x_blk + pe_blk)                 # x + out + pe, each double-buffered


def _pick_tile_s(S: int, B: int, D: int, itemsize: int,
                 target_x_bytes: int, vmem_budget: int) -> int:
    """Multiple-of-8 sequence tile sized against padded VMEM usage."""
    d_pad = _round_up(D, 128)
    # Largest multiple-of-8 tile whose padded x block is ~target_x_bytes.
    ts = max(8, (target_x_bytes // max(1, B * d_pad * itemsize)) // 8 * 8)
    ts = min(ts, _round_up(S, 8))                   # never larger than (padded) S
    if S > 8:
        # Keep >= 2 grid steps so the "parallel" axis feeds both v7x TensorCores.
        ts = min(ts, max(8, ((S - 1) // 8) * 8))
    # Shrink until the double-buffered, padded footprint fits the budget.
    while ts > 8 and _vmem_estimate(B, ts, D, itemsize) > (vmem_budget * 3) // 4:
        ts = max(8, (ts // 2) // 8 * 8)
    return ts


# --------------------------------------------------------------------------- #
# Forward wrapper
# --------------------------------------------------------------------------- #
def positional_encoding(x: jnp.ndarray, pe: jnp.ndarray) -> jnp.ndarray:
    """x: (B, S, D); pe: (1, max_len, D), pre-built in x.dtype. Returns x + pe[:, :S]."""
    B, S, D = x.shape
    _, max_len, d_pe = pe.shape
    assert d_pe == D, "d_model mismatch between x and PE table"
    assert S <= max_len, "sequence length exceeds PE table max_len"

    if pe.dtype != x.dtype:
        # Fallback only — callers should build the table in x.dtype once
        # (_make_pe_table(..., dtype=x.dtype)) so this full-table cast never
        # runs inside the per-call path.
        pe = pe.astype(x.dtype)

    itemsize = jnp.dtype(x.dtype).itemsize
    target_x_bytes, vmem_budget, vmem_phys_cap = _generation_params()
    tile_s = _pick_tile_s(S, B, D, itemsize, target_x_bytes, vmem_budget)
    grid_s = pl.cdiv(S, tile_s)

    # Scoped-VMEM limit: the per-generation budget, raised (up to a physical
    # cap) if even the minimum tile needs more than the budget.
    estimate = _vmem_estimate(B, tile_s, D, itemsize)
    vmem_limit = int(max(vmem_budget, min(estimate + (4 << 20), vmem_phys_cap)))

    out = pl.pallas_call(
        _add_pe_kernel,
        out_shape=jax.ShapeDtypeStruct((B, S, D), x.dtype),
        grid_spec=pltpu.PrefetchScalarGridSpec(
            num_scalar_prefetch=0,
            grid=(grid_s,),
            in_specs=[
                # x chunk: all batch rows, tile_s sequence rows, full D (lane-dense).
                pl.BlockSpec((B, tile_s, D), lambda s: (0, s, 0)),
                # Shared PE chunk: only rows [0, S) of the table are ever touched;
                # the pe[:, :S] slice is never materialized in HBM.
                pl.BlockSpec((1, tile_s, D), lambda s: (0, s, 0)),
            ],
            out_specs=pl.BlockSpec((B, tile_s, D), lambda s: (0, s, 0)),
        ),
        # In-place add: output aliases input 0. Callers that donate x avoid a
        # second (B, S, D) HBM buffer; non-donating callers are still correct.
        input_output_aliases={0: 0},
        compiler_params=pltpu.CompilerParams(
            dimension_semantics=("parallel",),
            vmem_limit_bytes=vmem_limit,
        ),
    )(x, pe)
    return out


if __name__ == "__main__":
    B, S, D = 2, 8, 32

    key = jax.random.PRNGKey(0)
    x = jax.random.normal(key, (B, S, D), dtype=jnp.float32)
    # PE table built once, already in x.dtype (max_len=5000, same as PyTorch default).
    pe = _make_pe_table(D, max_len=5000, dtype=x.dtype)

    # Reference computed (and materialized) BEFORE the call because x is donated.
    ref = jax.block_until_ready(x + pe[:, :S, :])

    fwd = jax.jit(positional_encoding, donate_argnums=(0,))
    out = jax.block_until_ready(fwd(x, pe))

    assert out.shape == (B, S, D)
    assert out.dtype == ref.dtype
    assert jnp.allclose(out, ref, atol=1e-6), "mismatch vs reference"

    print("KERNEL_OK")
</pallas_src>

<mosaic_0001>
module attributes {stable_mosaic.version = 11 : i64} {
  func.func @_add_pe_kernel(%arg0: i32, %arg1: memref<2x8x32xf32, #tpu.memory_space<vmem>>, %arg2: memref<1x8x32xf32, #tpu.memory_space<vmem>>, %arg3: memref<2x8x32xf32, #tpu.memory_space<vmem>>) attributes {dimension_semantics = [#tpu.dimension_semantics<parallel>], iteration_bounds = array<i64: 1>, scalar_prefetch = 0 : i64, scratch_operands = 0 : i64, tpu.core_type = #tpu.core_type<tc>, window_params = [{transform_indices = @transform_0, window_bounds = array<i64: 2, 8, 32>}, {transform_indices = @transform_1, window_bounds = array<i64: 1, 8, 32>}, {transform_indices = @transform_2, window_bounds = array<i64: 2, 8, 32>}]} {
    %c0 = arith.constant 0 : index
    %c0_0 = arith.constant 0 : index
    %c0_1 = arith.constant 0 : index
    %0 = vector.load %arg1[%c0, %c0_0, %c0_1] : memref<2x8x32xf32, #tpu.memory_space<vmem>>, vector<2x8x32xf32>
    %c0_2 = arith.constant 0 : index
    %c0_3 = arith.constant 0 : index
    %c0_4 = arith.constant 0 : index
    %1 = vector.load %arg2[%c0_2, %c0_3, %c0_4] : memref<1x8x32xf32, #tpu.memory_space<vmem>>, vector<1x8x32xf32>
    %2 = vector.broadcast %1 : vector<1x8x32xf32> to vector<2x8x32xf32>
    %3 = arith.addf %0, %2 : vector<2x8x32xf32>
    %c0_5 = arith.constant 0 : index
    %c0_6 = arith.constant 0 : index
    %c0_7 = arith.constant 0 : index
    %4 = vector.load %arg3[%c0_5, %c0_6, %c0_7] : memref<2x8x32xf32, #tpu.memory_space<vmem>>, vector<2x8x32xf32>
    tpu.vector_store %arg3[%c0_5, %c0_6, %c0_7], %3 {strides = array<i32>} : memref<2x8x32xf32, #tpu.memory_space<vmem>>, vector<2x8x32xf32>,
    return
  }
  func.func @transform_0(%arg0: i32) -> (i32, i32, i32) {
    %c0_i32 = arith.constant 0 : i32
    %c0_i32_0 = arith.constant 0 : i32
    %c0_i32_1 = arith.constant 0 : i32
    return %c0_i32, %arg0, %c0_i32_0 : i32, i32, i32
  }
  func.func @transform_1(%arg0: i32) -> (i32, i32, i32) {
    %c0_i32 = arith.constant 0 : i32
    %c0_i32_0 = arith.constant 0 : i32
    %c0_i32_1 = arith.constant 0 : i32
    return %c0_i32, %arg0, %c0_i32_0 : i32, i32, i32
  }
  func.func @transform_2(%arg0: i32) -> (i32, i32, i32) {
    %c0_i32 = arith.constant 0 : i32
    %c0_i32_0 = arith.constant 0 : i32
    %c0_i32_1 = arith.constant 0 : i32
    return %c0_i32, %arg0, %c0_i32_0 : i32, i32, i32
  }
}

</mosaic_0001>

<llo_original>
// kernel: positional_encoding.1
$region0: #{positional_encoding.1}
  #allocation0 [shape = 'u32[]', space=smem, size = 0x4, offset = 0x4, fixed_abs, tag = 'smem constant byte address 0x4 - core index']
  #allocation1 [shape = 'u32[144,128]{1,0:T(1,128)}', space=vmem, size = 0x12000, scoped, tag = 'internal scratch']
  %s0 = inlined_call_operand.hbm [shape: f32[2,8,32], index: 0, kind: input, shape index: {}, may-alias: {0,2}]
  %s1 = inlined_call_operand.vmem [shape: f32[1,5000,32], index: 1, kind: input, shape index: {}]
  %s2 = inlined_call_operand.hbm [shape: f32[2,8,32], index: 2, kind: output, shape index: {}, may-alias: {0,2}]
  %s3 = sld [smem:[#allocation0]]
  $region22: #{positional_encoding.1} parent=0
    _
  %s5 = ssub.s32 1, %s3
  %s6 = scalar_select 0, %s5, %s3
  $region1: #{positional_encoding.1} parent=0
    #allocation2 [shape = 'u8[8192]{0}', space=vmem, size = 0x2000, scoped, tag = 'input window, operand 0, single buffered']
    #allocation3 [shape = 's32[1]{0}', space=sflag, size = 0x4, scoped, tag = 'scoped memory for positional_encoding.1']
    #allocation4 [shape = 's32[1]{0}', space=sflag, size = 0x4, scoped, tag = 'scoped memory for positional_encoding.1']
    #allocation5 [shape = 'u8[8192]{0}', space=vmem, size = 0x2000, scoped, tag = 'output window, operand 0, single buffered']
    %7 = vsyncpa [#allocation3], 0
    %8 = vsyncpa [#allocation4], 0
    // Predicated region
    $region2: #{positional_encoding.1} parent=1 // pred_check
      _
    $region3: #{positional_encoding.1} parent=1 // pred_check_branch
      %10 = sbr.rel (0) target = $region5
    $region4: #{positional_encoding.1} parent=1 // pred_region
      %s12 = ssub.s32 256, 256
      %13 = vsyncadd [#allocation3], %s12
      %s14 = sshll.u32 [#allocation2], 4
      %s15 = int_to_ptr.vmem [resolvable:$true] %s14
      %20 = dma.hbm_to_vmem [thread:$0]  %s0, 256, %s15, [#allocation3], 128, 128, 8
    $region5: #{positional_encoding.1} parent=1 // pred_fallthru
      _
    // Predicated region
    $region6: #{positional_encoding.1} parent=1 // pred_check
      _
    $region7: #{positional_encoding.1} parent=1 // pred_check_branch
      %22 = sbr.rel (0) target = $region9
    $region8: #{positional_encoding.1} parent=1 // pred_region
      _
    $region9: #{positional_encoding.1} parent=1 // pred_fallthru
      _
    // Predicated region
    $region10: #{positional_encoding.1} parent=1 // pred_check
      _
    $region11: #{positional_encoding.1} parent=1 // pred_check_branch
      %24 = sbr.rel (0) target = $region13
    $region12: #{positional_encoding.1} parent=1 // pred_region
      %25 = dma.done [#allocation3], 256
    $region13: #{positional_encoding.1} parent=1 // pred_fallthru
      _
    %v26 = vld [vmem:[#allocation2] sm:$0xff]
    %v27 = vld [vmem:[#allocation2 + $0x8] sm:$0xff]
    %v28 = vld [vmem:[%s1] sm:$0xff]
    %v29 = vadd.f32 %v26, %v28
    %v30 = vadd.f32 %v27, %v28
    %vm31 = vcmask 261120
    %32 = vst.msk [vmem:[#allocation5] sm:$0xff] %vm31, %v29
    %33 = vst.msk [vmem:[#allocation5 + $0x8] sm:$0xff] %vm31, %v30
    // Predicated region
    $region14: #{positional_encoding.1} parent=1 // pred_check
      _
    $region15: #{positional_encoding.1} parent=1 // pred_check_branch
      %35 = sbr.rel (0) target = $region17
    $region16: #{positional_encoding.1} parent=1 // pred_region
      %s37 = ssub.s32 256, 256
      %38 = vsyncadd [#allocation4], %s37
      %s39 = sshll.u32 [#allocation5], 4
      %s40 = int_to_ptr.vmem [resolvable:$true] %s39
      %45 = dma.vmem_to_hbm [thread:$0]  %s40, 256, %s2, [#allocation4], 128, 128, 8
    $region17: #{positional_encoding.1} parent=1 // pred_fallthru
      _
    // Predicated region
    $region18: #{positional_encoding.1} parent=1 // pred_check
      _
    $region19: #{positional_encoding.1} parent=1 // pred_check_branch
      %47 = sbr.rel (0) target = $region21
    $region20: #{positional_encoding.1} parent=1 // pred_region
      %48 = dma.done [#allocation4], 256
    $region21: #{positional_encoding.1} parent=1 // pred_fallthru
      _
    %49 = vsyncpa [#allocation3], 1
    %50 = vsyncpa [#allocation4], 1

</llo_original>
